<compile_context>
chip_gen: v5e
topology: v5e:2x2
jax: 0.10.0
libtpu: 0.0.40
codegen_flags: <defaults>
</compile_context>

<pallas_src>
import functools

import jax
import jax.numpy as jnp
from jax import lax
from jax.experimental import pallas as pl
from jax.experimental.pallas import tpu as pltpu


def _shift_rows(v, down):
    """Shift a (H, L) value by one row along H with zero fill (SAME padding in H).

    down=True : row h <- v[h-1], row 0     zeroed   (supplies the ky=0 tap)
    down=False: row h <- v[h+1], row H-1   zeroed   (supplies the ky=2 tap)
    Uses pltpu.roll (XLU) + a select mask instead of slices/concats.
    """
    n = v.shape[0]
    shift = 1 if down else n - 1                      # n-1 == -1 (mod n)
    rolled = pltpu.roll(v, shift=shift, axis=0)
    rows = lax.broadcasted_iota(jnp.int32, v.shape, 0)
    edge = 0 if down else n - 1
    return jnp.where(rows == edge, jnp.zeros_like(rolled), rolled)


def _vgg_block_kernel(x_ref, b1_ref, bias1_ref, b2_ref, bias2_ref, out_ref,
                      *, compute_dtype):
    """Fused conv1+bn1+relu -> conv2+bn2+relu for one batch element.

    x_ref     : (1, H, C_in*W)            lane-dense input rows (compute_dtype)
    b1_ref    : (3, C_in*W,  C_mid*W)     banded conv1 weights (one slab per ky)
    bias1_ref : (1, C_mid*W)              folded BN1 bias, tiled over W (f32)
    b2_ref    : (3, C_mid*W, C_out*W)     banded conv2 weights
    bias2_ref : (1, C_out*W)              folded BN2 bias (f32)
    out_ref   : (1, H, C_out*W)           lane-dense output rows
    """
    x = x_ref[0]                                            # (H, C_in*W)

    # conv1: one matmul per ky; row-shift the f32 partial products for SAME-H.
    p0 = jnp.dot(x, b1_ref[0], preferred_element_type=jnp.float32)
    p1 = jnp.dot(x, b1_ref[1], preferred_element_type=jnp.float32)
    p2 = jnp.dot(x, b1_ref[2], preferred_element_type=jnp.float32)
    acc1 = _shift_rows(p0, True) + p1 + _shift_rows(p2, False) + bias1_ref[...]
    y1 = jnp.maximum(acc1, 0.0).astype(compute_dtype)       # (H, C_mid*W), in regs

    # conv2 on the in-register intermediate (no padded VMEM scratch).
    q0 = jnp.dot(y1, b2_ref[0], preferred_element_type=jnp.float32)
    q1 = jnp.dot(y1, b2_ref[1], preferred_element_type=jnp.float32)
    q2 = jnp.dot(y1, b2_ref[2], preferred_element_type=jnp.float32)
    acc2 = _shift_rows(q0, True) + q1 + _shift_rows(q2, False) + bias2_ref[...]
    out_ref[0] = jnp.maximum(acc2, 0.0).astype(out_ref.dtype)


def vgg_block_pallas(x_nchw, w1_hwio, conv1_b, bn1, w2_hwio, conv2_b, bn2,
                     eps=1e-5, *, compute_dtype=jnp.bfloat16):
    """Fused VGGBlock. x_nchw: (N, C_in, H, W) -> (N, C_out, H, W), f32 output.

    compute_dtype: dtype of MXU operands (accumulation is always f32).
      bf16 recommended on v6e/v7x; f32 gives bit-accurate-to-reference results.
    """
    N, C_in, H, W = x_nchw.shape
    C_mid = w1_hwio.shape[-1]
    C_out = w2_hwio.shape[-1]

    # Fold BatchNorm (eval mode) into the conv: scale goes into the weights
    # (valid because it is per-output-channel and applied before the ReLU),
    # bias absorbs conv bias + BN shift.
    def fold(bn, conv_bias):
        gamma, beta, mean, var = bn
        scale = (gamma / jnp.sqrt(var + eps)).astype(jnp.float32)
        bias = (beta + (conv_bias - mean) * scale).astype(jnp.float32)
        return scale, bias

    s1, b1 = fold(bn1, conv1_b)
    s2, b2 = fold(bn2, conv2_b)
    w1f = w1_hwio.astype(jnp.float32) * s1          # (3,3,C_in,C_mid), scale on out-ch
    w2f = w2_hwio.astype(jnp.float32) * s2

    # Banded (im2col-along-W) weight slabs:
    #   B[ky, c*W + wp, m*W + w] = Wf[ky, wp-w+1, c, m]  if |wp-w| <= 1 else 0
    # so that  out2d[h, m*W+w] = sum_ky  x2d_shifted_ky[h, :] @ B[ky]
    # reproduces SAME 3x3 conv (zero W-padding is implicit: out-of-range taps
    # simply have no band entry).
    def banded(wf, cin, cout):
        wp = jnp.arange(W)[:, None, None]
        kx = jnp.arange(3)[None, :, None]
        w_ = jnp.arange(W)[None, None, :]
        ind = (wp == w_ + kx - 1).astype(jnp.float32)              # (W, 3, W)
        slab = jnp.einsum('pkw,ykcm->ycpmw', ind, wf)              # (3,cin,W,cout,W)
        return slab.reshape(3, cin * W, cout * W).astype(compute_dtype)

    big_w1 = banded(w1f, C_in, C_mid)                # (3, C_in*W,  C_mid*W)
    big_w2 = banded(w2f, C_mid, C_out)               # (3, C_mid*W, C_out*W)

    bias1 = jnp.repeat(b1, W).reshape(1, C_mid * W)  # [m*W + w] -> b1[m]  (f32)
    bias2 = jnp.repeat(b2, W).reshape(1, C_out * W)

    # NCHW -> (N, H, C*W) lane-dense rows (channel-major within a row). This is
    # a non-minor-axis transpose (W stays minor): much cheaper than a full
    # NCHW->NHWC relayout, and no jnp.pad pass is needed at all.
    x2d = jnp.transpose(x_nchw, (0, 2, 1, 3)).reshape(N, H, C_in * W)
    x2d = x2d.astype(compute_dtype)

    kernel = functools.partial(_vgg_block_kernel, compute_dtype=compute_dtype)

    out2d = pl.pallas_call(
        kernel,
        out_shape=jax.ShapeDtypeStruct((N, H, C_out * W), jnp.float32),
        grid_spec=pltpu.PrefetchScalarGridSpec(
            num_scalar_prefetch=0,
            grid=(N,),
            in_specs=[
                pl.BlockSpec((1, H, C_in * W), lambda i: (i, 0, 0)),
                pl.BlockSpec((3, C_in * W, C_mid * W), lambda i: (0, 0, 0)),
                pl.BlockSpec((1, C_mid * W), lambda i: (0, 0)),
                pl.BlockSpec((3, C_mid * W, C_out * W), lambda i: (0, 0, 0)),
                pl.BlockSpec((1, C_out * W), lambda i: (0, 0)),
            ],
            out_specs=pl.BlockSpec((1, H, C_out * W), lambda i: (i, 0, 0)),
        ),
        compiler_params=pltpu.CompilerParams(
            dimension_semantics=("parallel",)),      # N>=2 keeps both v7x TCs busy
    )(x2d, big_w1, bias1, big_w2, bias2)

    # (N, H, C_out*W) -> NCHW (again a non-minor transpose).
    return jnp.transpose(out2d.reshape(N, H, C_out, W), (0, 2, 1, 3))


def _reference(x_nchw, w1_hwio, conv1_b, bn1, w2_hwio, conv2_b, bn2, eps=1e-5):
    """Pure-JAX reference (XLA conv, f32) matching the PyTorch forward (eval BN)."""
    x = jnp.transpose(x_nchw, (0, 2, 3, 1)).astype(jnp.float32)

    def block(x, w, cb, bn):
        y = lax.conv_general_dilated(
            x, w.astype(jnp.float32), window_strides=(1, 1), padding="SAME",
            dimension_numbers=("NHWC", "HWIO", "NHWC")) + cb
        gamma, beta, mean, var = bn
        y = (y - mean) / jnp.sqrt(var + eps) * gamma + beta
        return jnp.maximum(y, 0.0)

    y = block(x, w1_hwio, conv1_b, bn1)
    y = block(y, w2_hwio, conv2_b, bn2)
    return jnp.transpose(y, (0, 3, 1, 2))


if __name__ == "__main__":
    # Small shapes consistent with VGGBlock(in=4, middle=8, out=8).
    N, C_in, C_mid, C_out, H, W = 2, 4, 8, 8, 16, 16

    key = jax.random.PRNGKey(0)
    ks = jax.random.split(key, 9)

    # Parameter shapes match nn.Conv2d (as HWIO) / nn.BatchNorm2d.
    w1 = jax.random.normal(ks[0], (3, 3, C_in, C_mid), jnp.float32) * 0.1
    b1c = jax.random.normal(ks[1], (C_mid,), jnp.float32) * 0.1
    w2 = jax.random.normal(ks[2], (3, 3, C_mid, C_out), jnp.float32) * 0.1
    b2c = jax.random.normal(ks[3], (C_out,), jnp.float32) * 0.1

    bn1 = (jax.random.uniform(ks[4], (C_mid,), minval=0.5, maxval=1.5),   # gamma
           jax.random.normal(ks[5], (C_mid,)) * 0.1,                      # beta
           jnp.zeros((C_mid,), jnp.float32),                              # running_mean
           jnp.ones((C_mid,), jnp.float32))                               # running_var
    bn2 = (jax.random.uniform(ks[6], (C_out,), minval=0.5, maxval=1.5),
           jax.random.normal(ks[7], (C_out,)) * 0.1,
           jnp.zeros((C_out,), jnp.float32),
           jnp.ones((C_out,), jnp.float32))

    x = jax.random.normal(ks[8], (N, C_in, H, W), jnp.float32)

    ref = _reference(x, w1, b1c, bn1, w2, b2c, bn2)

    # Exact-precision path (f32 MXU operands) — tight tolerance.
    f32_fn = jax.jit(functools.partial(vgg_block_pallas, compute_dtype=jnp.float32))
    out_f32 = jax.block_until_ready(f32_fn(x, w1, b1c, bn1, w2, b2c, bn2))
    assert out_f32.shape == (N, C_out, H, W)
    assert jnp.allclose(out_f32, ref, atol=2e-4, rtol=2e-4), \
        f"f32 max err {float(jnp.max(jnp.abs(out_f32 - ref)))}"

    # bf16 fast path (v6e/v7x MXU rate, half the DMA bytes) — loose tolerance.
    bf16_fn = jax.jit(functools.partial(vgg_block_pallas, compute_dtype=jnp.bfloat16))
    out_bf16 = jax.block_until_ready(bf16_fn(x, w1, b1c, bn1, w2, b2c, bn2))
    assert out_bf16.shape == (N, C_out, H, W)
    assert jnp.allclose(out_bf16, ref, atol=1e-1, rtol=5e-2), \
        f"bf16 max err {float(jnp.max(jnp.abs(out_bf16 - ref)))}"

    print("KERNEL_OK")
</pallas_src>

<mosaic_0001>
module attributes {stable_mosaic.version = 11 : i64} {
  func.func @_vgg_block_kernel(%arg0: i32, %arg1: memref<1x16x64xf32, #tpu.memory_space<vmem>>, %arg2: memref<3x64x128xf32, #tpu.memory_space<vmem>>, %arg3: memref<1x128xf32, #tpu.memory_space<vmem>>, %arg4: memref<3x128x128xf32, #tpu.memory_space<vmem>>, %arg5: memref<1x128xf32, #tpu.memory_space<vmem>>, %arg6: memref<1x16x128xf32, #tpu.memory_space<vmem>>) attributes {dimension_semantics = [#tpu.dimension_semantics<parallel>], iteration_bounds = array<i64: 2>, scalar_prefetch = 0 : i64, scratch_operands = 0 : i64, tpu.core_type = #tpu.core_type<tc>, window_params = [{transform_indices = @transform_0, window_bounds = array<i64: 1, 16, 64>}, {pipeline_mode = #tpu.pipeline_mode<synchronous>, transform_indices = @transform_1, window_bounds = array<i64: 3, 64, 128>}, {pipeline_mode = #tpu.pipeline_mode<synchronous>, transform_indices = @transform_2, window_bounds = array<i64: 1, 128>}, {pipeline_mode = #tpu.pipeline_mode<synchronous>, transform_indices = @transform_3, window_bounds = array<i64: 3, 128, 128>}, {pipeline_mode = #tpu.pipeline_mode<synchronous>, transform_indices = @transform_4, window_bounds = array<i64: 1, 128>}, {transform_indices = @transform_5, window_bounds = array<i64: 1, 16, 128>}]} {
    %c0 = arith.constant 0 : index
    %c0_0 = arith.constant 0 : index
    %c0_1 = arith.constant 0 : index
    %0 = vector.load %arg1[%c0, %c0_0, %c0_1] : memref<1x16x64xf32, #tpu.memory_space<vmem>>, vector<1x16x64xf32>
    %1 = vector.shape_cast %0 : vector<1x16x64xf32> to vector<16x64xf32>
    %c0_2 = arith.constant 0 : index
    %c0_3 = arith.constant 0 : index
    %c0_4 = arith.constant 0 : index
    %2 = vector.load %arg2[%c0_2, %c0_3, %c0_4] : memref<3x64x128xf32, #tpu.memory_space<vmem>>, vector<1x64x128xf32>
    %3 = vector.shape_cast %2 : vector<1x64x128xf32> to vector<64x128xf32>
    %cst = arith.constant dense<0.000000e+00> : vector<16x128xf32>
    %4 = tpu.matmul %1, %3, %cst {dimension_numbers = #tpu.dot_dimension_numbers<[1], [0], [0], [1], [0, 0, 1, 1], [], []>} : vector<16x64xf32>, vector<64x128xf32>, vector<16x128xf32> -> vector<16x128xf32>
    %c1 = arith.constant 1 : index
    %c0_5 = arith.constant 0 : index
    %c0_6 = arith.constant 0 : index
    %5 = vector.load %arg2[%c1, %c0_5, %c0_6] : memref<3x64x128xf32, #tpu.memory_space<vmem>>, vector<1x64x128xf32>
    %6 = vector.shape_cast %5 : vector<1x64x128xf32> to vector<64x128xf32>
    %cst_7 = arith.constant dense<0.000000e+00> : vector<16x128xf32>
    %7 = tpu.matmul %1, %6, %cst_7 {dimension_numbers = #tpu.dot_dimension_numbers<[1], [0], [0], [1], [0, 0, 1, 1], [], []>} : vector<16x64xf32>, vector<64x128xf32>, vector<16x128xf32> -> vector<16x128xf32>
    %c2 = arith.constant 2 : index
    %c0_8 = arith.constant 0 : index
    %c0_9 = arith.constant 0 : index
    %8 = vector.load %arg2[%c2, %c0_8, %c0_9] : memref<3x64x128xf32, #tpu.memory_space<vmem>>, vector<1x64x128xf32>
    %9 = vector.shape_cast %8 : vector<1x64x128xf32> to vector<64x128xf32>
    %cst_10 = arith.constant dense<0.000000e+00> : vector<16x128xf32>
    %10 = tpu.matmul %1, %9, %cst_10 {dimension_numbers = #tpu.dot_dimension_numbers<[1], [0], [0], [1], [0, 0, 1, 1], [], []>} : vector<16x64xf32>, vector<64x128xf32>, vector<16x128xf32> -> vector<16x128xf32>
    %c1_i32 = arith.constant 1 : i32
    %11 = tpu.dynamic_rotate %4 by %c1_i32 dim 0 : vector<16x128xf32>, i32 -> vector<16x128xf32>
    %12 = tpu.iota {dimensions = array<i32: 0>} : vector<16x128xi32>
    %c0_i32 = arith.constant 0 : i32
    %13 = vector.broadcast %c0_i32 : i32 to vector<16x128xi32>
    %14 = arith.cmpi eq, %12, %13 : vector<16x128xi32>
    %cst_11 = arith.constant 0.000000e+00 : f32
    %15 = vector.broadcast %cst_11 : f32 to vector<16x128xf32>
    %16 = arith.select %14, %15, %11 : vector<16x128xi1>, vector<16x128xf32>
    %17 = arith.addf %16, %7 : vector<16x128xf32>
    %c15_i32 = arith.constant 15 : i32
    %18 = tpu.dynamic_rotate %10 by %c15_i32 dim 0 : vector<16x128xf32>, i32 -> vector<16x128xf32>
    %19 = tpu.iota {dimensions = array<i32: 0>} : vector<16x128xi32>
    %c15_i32_12 = arith.constant 15 : i32
    %20 = vector.broadcast %c15_i32_12 : i32 to vector<16x128xi32>
    %21 = arith.cmpi eq, %19, %20 : vector<16x128xi32>
    %cst_13 = arith.constant 0.000000e+00 : f32
    %22 = vector.broadcast %cst_13 : f32 to vector<16x128xf32>
    %23 = arith.select %21, %22, %18 : vector<16x128xi1>, vector<16x128xf32>
    %24 = arith.addf %17, %23 : vector<16x128xf32>
    %c0_14 = arith.constant 0 : index
    %c0_15 = arith.constant 0 : index
    %25 = vector.load %arg3[%c0_14, %c0_15] : memref<1x128xf32, #tpu.memory_space<vmem>>, vector<1x128xf32>
    %26 = vector.broadcast %25 : vector<1x128xf32> to vector<16x128xf32>
    %27 = arith.addf %24, %26 : vector<16x128xf32>
    %cst_16 = arith.constant 0.000000e+00 : f32
    %28 = vector.broadcast %cst_16 : f32 to vector<16x128xf32>
    %29 = arith.maximumf %27, %28 : vector<16x128xf32>
    %c0_17 = arith.constant 0 : index
    %c0_18 = arith.constant 0 : index
    %c0_19 = arith.constant 0 : index
    %30 = vector.load %arg4[%c0_17, %c0_18, %c0_19] : memref<3x128x128xf32, #tpu.memory_space<vmem>>, vector<1x128x128xf32>
    %31 = vector.shape_cast %30 : vector<1x128x128xf32> to vector<128x128xf32>
    %cst_20 = arith.constant dense<0.000000e+00> : vector<16x128xf32>
    %32 = tpu.matmul %29, %31, %cst_20 {dimension_numbers = #tpu.dot_dimension_numbers<[1], [0], [0], [1], [0, 0, 1, 1], [], []>} : vector<16x128xf32>, vector<128x128xf32>, vector<16x128xf32> -> vector<16x128xf32>
    %c1_21 = arith.constant 1 : index
    %c0_22 = arith.constant 0 : index
    %c0_23 = arith.constant 0 : index
    %33 = vector.load %arg4[%c1_21, %c0_22, %c0_23] : memref<3x128x128xf32, #tpu.memory_space<vmem>>, vector<1x128x128xf32>
    %34 = vector.shape_cast %33 : vector<1x128x128xf32> to vector<128x128xf32>
    %cst_24 = arith.constant dense<0.000000e+00> : vector<16x128xf32>
    %35 = tpu.matmul %29, %34, %cst_24 {dimension_numbers = #tpu.dot_dimension_numbers<[1], [0], [0], [1], [0, 0, 1, 1], [], []>} : vector<16x128xf32>, vector<128x128xf32>, vector<16x128xf32> -> vector<16x128xf32>
    %c2_25 = arith.constant 2 : index
    %c0_26 = arith.constant 0 : index
    %c0_27 = arith.constant 0 : index
    %36 = vector.load %arg4[%c2_25, %c0_26, %c0_27] : memref<3x128x128xf32, #tpu.memory_space<vmem>>, vector<1x128x128xf32>
    %37 = vector.shape_cast %36 : vector<1x128x128xf32> to vector<128x128xf32>
    %cst_28 = arith.constant dense<0.000000e+00> : vector<16x128xf32>
    %38 = tpu.matmul %29, %37, %cst_28 {dimension_numbers = #tpu.dot_dimension_numbers<[1], [0], [0], [1], [0, 0, 1, 1], [], []>} : vector<16x128xf32>, vector<128x128xf32>, vector<16x128xf32> -> vector<16x128xf32>
    %c1_i32_29 = arith.constant 1 : i32
    %39 = tpu.dynamic_rotate %32 by %c1_i32_29 dim 0 : vector<16x128xf32>, i32 -> vector<16x128xf32>
    %40 = tpu.iota {dimensions = array<i32: 0>} : vector<16x128xi32>
    %c0_i32_30 = arith.constant 0 : i32
    %41 = vector.broadcast %c0_i32_30 : i32 to vector<16x128xi32>
    %42 = arith.cmpi eq, %40, %41 : vector<16x128xi32>
    %cst_31 = arith.constant 0.000000e+00 : f32
    %43 = vector.broadcast %cst_31 : f32 to vector<16x128xf32>
    %44 = arith.select %42, %43, %39 : vector<16x128xi1>, vector<16x128xf32>
    %45 = arith.addf %44, %35 : vector<16x128xf32>
    %c15_i32_32 = arith.constant 15 : i32
    %46 = tpu.dynamic_rotate %38 by %c15_i32_32 dim 0 : vector<16x128xf32>, i32 -> vector<16x128xf32>
    %47 = tpu.iota {dimensions = array<i32: 0>} : vector<16x128xi32>
    %c15_i32_33 = arith.constant 15 : i32
    %48 = vector.broadcast %c15_i32_33 : i32 to vector<16x128xi32>
    %49 = arith.cmpi eq, %47, %48 : vector<16x128xi32>
    %cst_34 = arith.constant 0.000000e+00 : f32
    %50 = vector.broadcast %cst_34 : f32 to vector<16x128xf32>
    %51 = arith.select %49, %50, %46 : vector<16x128xi1>, vector<16x128xf32>
    %52 = arith.addf %45, %51 : vector<16x128xf32>
    %c0_35 = arith.constant 0 : index
    %c0_36 = arith.constant 0 : index
    %53 = vector.load %arg5[%c0_35, %c0_36] : memref<1x128xf32, #tpu.memory_space<vmem>>, vector<1x128xf32>
    %54 = vector.broadcast %53 : vector<1x128xf32> to vector<16x128xf32>
    %55 = arith.addf %52, %54 : vector<16x128xf32>
    %cst_37 = arith.constant 0.000000e+00 : f32
    %56 = vector.broadcast %cst_37 : f32 to vector<16x128xf32>
    %57 = arith.maximumf %55, %56 : vector<16x128xf32>
    %c0_38 = arith.constant 0 : index
    %c0_39 = arith.constant 0 : index
    %c0_40 = arith.constant 0 : index
    %58 = vector.load %arg6[%c0_38, %c0_39, %c0_40] : memref<1x16x128xf32, #tpu.memory_space<vmem>>, vector<1x16x128xf32>
    %59 = vector.shape_cast %58 : vector<1x16x128xf32> to vector<16x128xf32>
    %60 = vector.shape_cast %57 : vector<16x128xf32> to vector<1x16x128xf32>
    tpu.vector_store %arg6[%c0_38, %c0_39, %c0_40], %60 {strides = array<i32>} : memref<1x16x128xf32, #tpu.memory_space<vmem>>, vector<1x16x128xf32>,
    return
  }
  func.func @transform_0(%arg0: i32) -> (i32, i32, i32) {
    %c0_i32 = arith.constant 0 : i32
    %c0_i32_0 = arith.constant 0 : i32
    %c0_i32_1 = arith.constant 0 : i32
    return %arg0, %c0_i32, %c0_i32_0 : i32, i32, i32
  }
  func.func @transform_1(%arg0: i32) -> (i32, i32, i32) {
    %c0_i32 = arith.constant 0 : i32
    %c0_i32_0 = arith.constant 0 : i32
    %c0_i32_1 = arith.constant 0 : i32
    %c0_i32_2 = arith.constant 0 : i32
    return %c0_i32, %c0_i32_0, %c0_i32_1 : i32, i32, i32
  }
  func.func @transform_2(%arg0: i32) -> (i32, i32) {
    %c0_i32 = arith.constant 0 : i32
    %c0_i32_0 = arith.constant 0 : i32
    %c0_i32_1 = arith.constant 0 : i32
    return %c0_i32, %c0_i32_0 : i32, i32
  }
  func.func @transform_3(%arg0: i32) -> (i32, i32, i32) {
    %c0_i32 = arith.constant 0 : i32
    %c0_i32_0 = arith.constant 0 : i32
    %c0_i32_1 = arith.constant 0 : i32
    %c0_i32_2 = arith.constant 0 : i32
    return %c0_i32, %c0_i32_0, %c0_i32_1 : i32, i32, i32
  }
  func.func @transform_4(%arg0: i32) -> (i32, i32) {
    %c0_i32 = arith.constant 0 : i32
    %c0_i32_0 = arith.constant 0 : i32
    %c0_i32_1 = arith.constant 0 : i32
    return %c0_i32, %c0_i32_0 : i32, i32
  }
  func.func @transform_5(%arg0: i32) -> (i32, i32, i32) {
    %c0_i32 = arith.constant 0 : i32
    %c0_i32_0 = arith.constant 0 : i32
    %c0_i32_1 = arith.constant 0 : i32
    return %arg0, %c0_i32, %c0_i32_0 : i32, i32, i32
  }
}

</mosaic_0001>

<llo_original>
// kernel: vgg_block_pallas.1
$region0: #{vgg_block_pallas.1}
  #allocation0 [shape = 'u32[]', space=smem, size = 0x4, offset = 0x4, fixed_abs, tag = 'smem constant byte address 0x4 - core index']
  #allocation1 [shape = 'u32[72,128]{1,0:T(1,128)}', space=vmem, size = 0x9000, scoped, tag = 'internal scratch']
  %s0 = inlined_call_operand.vmem [shape: f32[2,16,64], index: 0, kind: input, shape index: {}]
  %s1 = inlined_call_operand.vmem [shape: f32[3,64,128], index: 1, kind: input, shape index: {}]
  %s2 = inlined_call_operand.vmem [shape: f32[1,128], index: 2, kind: input, shape index: {}]
  %s3 = inlined_call_operand.vmem [shape: f32[3,128,128], index: 3, kind: input, shape index: {}]
  %s4 = inlined_call_operand.vmem [shape: f32[1,128], index: 4, kind: input, shape index: {}]
  %s5 = inlined_call_operand.vmem [shape: f32[2,16,128], index: 5, kind: output, shape index: {}]
  %s6 = sld [smem:[#allocation0]]
  $region53: #{vgg_block_pallas.1} parent=0
    _
  %s8 = ssub.s32 1, %s6
  %s9 = scalar_select 0, %s8, %s6
  loop: start=0, step=1, limit=4
  $region2: #{vgg_block_pallas.1} parent=0 // loop_pre_header
    _
  $region3: #{vgg_block_pallas.1} parent=0 // loop_header
    %s11 = sphi 0, %s15
    %p12 = scmp.ge.s32.totalorder %s11, 4
    %s21 = sphi 0, %s23
    %s24 = sphi 0, %s21
    %s25 = sphi 0, %s24
    %s41 = sphi 0, %s25
    %s45 = sphi 0, %s45
    %s47 = sphi 0, %s45
    %s48 = sphi 0, %s47
    %s62 = sphi 0, %s48
    %s66 = sphi 0, %s66
    %s68 = sphi 0, %s66
    %s69 = sphi 0, %s68
    %s83 = sphi 0, %s69
    %s87 = sphi 0, %s87
    %s89 = sphi 0, %s87
    %s90 = sphi 0, %s89
    %s104 = sphi 0, %s90
    %s108 = sphi 0, %s108
    %s110 = sphi 0, %s108
    %s111 = sphi 0, %s110
    %s125 = sphi 0, %s111
    %s131 = sphi 0, %s133
    %s134 = sphi 0, %s131
    %s135 = sphi 0, %s134
    %s151 = sphi 0, %s135
  $region4: #{vgg_block_pallas.1} parent=0 // loop_header_branch
    %14 = sbr.rel (%p12) target = $region8
  $region5: #{vgg_block_pallas.1} parent=0 // loop_body
    %s16 = ssub.s32 %s11, 1
    %s17 = ssub.s32 %s11, 2
    %s18 = sadd.s32 %s11, 1
    %s19 = ssub.s32 %s11, %s18
    %p20 = scmp.eq.s32.totalorder %s19, 0
    %s22 = sadd.s32 %s21, 1
    %s23 = scalar_select %p20, %s21, %s22
    %p26 = pneg %p20
    %p27 = scmp.eq.s32.totalorder %s11, 1
    %p28 = por %p26, %p27
    %p29 = scmp.ne.s32.totalorder %s21, %s24
    %p30 = scmp.eq.s32.totalorder %s11, 0
    %p31 = por %p29, %p30
    %p32 = scmp.ne.s32.totalorder %s21, %s24
    %p33 = scmp.eq.s32.totalorder %s16, 1
    %p34 = por %p32, %p33
    %p35 = scmp.ne.s32.totalorder %s24, %s25
    %p36 = scmp.eq.s32.totalorder %s16, 0
    %p37 = por %p35, %p36
    %p38 = scmp.ne.s32.totalorder %s24, %s25
    %p39 = scmp.eq.s32.totalorder %s17, 1
    %p40 = por %p38, %p39
    %p42 = scmp.ne.s32.totalorder %s25, %s41
    %p43 = scmp.eq.s32.totalorder %s17, 0
    %p44 = por %p42, %p43
    %s46 = sadd.s32 %s45, 1
    %p49 = scmp.eq.s32.totalorder %s11, 1
    %p50 = scmp.ne.s32.totalorder %s45, %s47
    %p51 = scmp.eq.s32.totalorder %s11, 0
    %p52 = por %p50, %p51
    %p53 = scmp.ne.s32.totalorder %s45, %s47
    %p54 = scmp.eq.s32.totalorder %s16, 1
    %p55 = por %p53, %p54
    %p56 = scmp.ne.s32.totalorder %s47, %s48
    %p57 = scmp.eq.s32.totalorder %s16, 0
    %p58 = por %p56, %p57
    %p59 = scmp.ne.s32.totalorder %s47, %s48
    %p60 = scmp.eq.s32.totalorder %s17, 1
    %p61 = por %p59, %p60
    %p63 = scmp.ne.s32.totalorder %s48, %s62
    %p64 = scmp.eq.s32.totalorder %s17, 0
    %p65 = por %p63, %p64
    %s67 = sadd.s32 %s66, 1
    %p70 = scmp.eq.s32.totalorder %s11, 1
    %p71 = scmp.ne.s32.totalorder %s66, %s68
    %p72 = scmp.eq.s32.totalorder %s11, 0
    %p73 = por %p71, %p72
    %p74 = scmp.ne.s32.totalorder %s66, %s68
    %p75 = scmp.eq.s32.totalorder %s16, 1
    %p76 = por %p74, %p75
    %p77 = scmp.ne.s32.totalorder %s68, %s69
    %p78 = scmp.eq.s32.totalorder %s16, 0
    %p79 = por %p77, %p78
    %p80 = scmp.ne.s32.totalorder %s68, %s69
    %p81 = scmp.eq.s32.totalorder %s17, 1
    %p82 = por %p80, %p81
    %p84 = scmp.ne.s32.totalorder %s69, %s83
    %p85 = scmp.eq.s32.totalorder %s17, 0
    %p86 = por %p84, %p85
    %s88 = sadd.s32 %s87, 1
    %p91 = scmp.eq.s32.totalorder %s11, 1
    %p92 = scmp.ne.s32.totalorder %s87, %s89
    %p93 = scmp.eq.s32.totalorder %s11, 0
    %p94 = por %p92, %p93
    %p95 = scmp.ne.s32.totalorder %s87, %s89
    %p96 = scmp.eq.s32.totalorder %s16, 1
    %p97 = por %p95, %p96
    %p98 = scmp.ne.s32.totalorder %s89, %s90
    %p99 = scmp.eq.s32.totalorder %s16, 0
    %p100 = por %p98, %p99
    %p101 = scmp.ne.s32.totalorder %s89, %s90
    %p102 = scmp.eq.s32.totalorder %s17, 1
    %p103 = por %p101, %p102
    %p105 = scmp.ne.s32.totalorder %s90, %s104
    %p106 = scmp.eq.s32.totalorder %s17, 0
    %p107 = por %p105, %p106
    %s109 = sadd.s32 %s108, 1
    %p112 = scmp.eq.s32.totalorder %s11, 1
    %p113 = scmp.ne.s32.totalorder %s108, %s110
    %p114 = scmp.eq.s32.totalorder %s11, 0
    %p115 = por %p113, %p114
    %p116 = scmp.ne.s32.totalorder %s108, %s110
    %p117 = scmp.eq.s32.totalorder %s16, 1
    %p118 = por %p116, %p117
    %p119 = scmp.ne.s32.totalorder %s110, %s111
    %p120 = scmp.eq.s32.totalorder %s16, 0
    %p121 = por %p119, %p120
    %p122 = scmp.ne.s32.totalorder %s110, %s111
    %p123 = scmp.eq.s32.totalorder %s17, 1
    %p124 = por %p122, %p123
    %p126 = scmp.ne.s32.totalorder %s111, %s125
    %p127 = scmp.eq.s32.totalorder %s17, 0
    %p128 = por %p126, %p127
    %s129 = ssub.s32 %s11, %s18
    %p130 = scmp.eq.s32.totalorder %s129, 0
    %s132 = sadd.s32 %s131, 1
    %s133 = scalar_select %p130, %s131, %s132
    %p136 = pneg %p130
    %p137 = scmp.eq.s32.totalorder %s11, 1
    %p138 = por %p136, %p137
    %p139 = scmp.ne.s32.totalorder %s131, %s134
    %p140 = scmp.eq.s32.totalorder %s11, 0
    %p141 = por %p139, %p140
    %p142 = scmp.ne.s32.totalorder %s131, %s134
    %p143 = scmp.eq.s32.totalorder %s16, 1
    %p144 = por %p142, %p143
    %p145 = scmp.ne.s32.totalorder %s134, %s135
    %p146 = scmp.eq.s32.totalorder %s16, 0
    %p147 = por %p145, %p146
    %p148 = scmp.ne.s32.totalorder %s134, %s135
    %p149 = scmp.eq.s32.totalorder %s17, 1
    %p150 = por %p148, %p149
    %p152 = scmp.ne.s32.totalorder %s135, %s151
    %p153 = scmp.eq.s32.totalorder %s17, 0
    %p154 = por %p152, %p153
    %p155 = scmp.le.s32.totalorder 1, %s11
    %p156 = scmp.lt.s32.totalorder %s11, 3
    %p157 = pnand %p155, %p156
    %p158 = pneg %p157
    // Predicated region
    $region9: #{vgg_block_pallas.1} parent=5 // pred_check
      _
    $region10: #{vgg_block_pallas.1} parent=5 // pred_check_branch
      %160 = sbr.rel (%p157) target = $region12
    $region11: #{vgg_block_pallas.1} parent=5 // pred_region
      %s161 = ssub.s32 %s11, 1
      // Predicated region
      $region13: #{vgg_block_pallas.1} parent=11 // pred_check
        %p162 = pneg %p58
      $region14: #{vgg_block_pallas.1} parent=11 // pred_check_branch
        %164 = sbr.rel (%p162) target = $region16
      $region15: #{vgg_block_pallas.1} parent=11 // pred_region
        _
      $region16: #{vgg_block_pallas.1} parent=11 // pred_fallthru
        _
      // Predicated region
      $region17: #{vgg_block_pallas.1} parent=11 // pred_check
        %p165 = pneg %p79
      $region18: #{vgg_block_pallas.1} parent=11 // pred_check_branch
        %167 = sbr.rel (%p165) target = $region20
      $region19: #{vgg_block_pallas.1} parent=11 // pred_region
        _
      $region20: #{vgg_block_pallas.1} parent=11 // pred_fallthru
        _
      // Predicated region
      $region21: #{vgg_block_pallas.1} parent=11 // pred_check
        %p168 = pneg %p100
      $region22: #{vgg_block_pallas.1} parent=11 // pred_check_branch
        %170 = sbr.rel (%p168) target = $region24
      $region23: #{vgg_block_pallas.1} parent=11 // pred_region
        _
      $region24: #{vgg_block_pallas.1} parent=11 // pred_fallthru
        _
      // Predicated region
      $region25: #{vgg_block_pallas.1} parent=11 // pred_check
        %p171 = pneg %p121
      $region26: #{vgg_block_pallas.1} parent=11 // pred_check_branch
        %173 = sbr.rel (%p171) target = $region28
      $region27: #{vgg_block_pallas.1} parent=11 // pred_region
        _
      $region28: #{vgg_block_pallas.1} parent=11 // pred_fallthru
        _
    $region12: #{vgg_block_pallas.1} parent=5 // pred_fallthru
      _
    %p174 = scmp.lt.s32.totalorder %s11, 2
    // Predicated region
    $region29: #{vgg_block_pallas.1} parent=5 // pred_check
      %p175 = pneg %p174
    $region30: #{vgg_block_pallas.1} parent=5 // pred_check_branch
      %177 = sbr.rel (%p175) target = $region32
    $region31: #{vgg_block_pallas.1} parent=5 // pred_region
      // Predicated region
      $region33: #{vgg_block_pallas.1} parent=31 // pred_check
        %p178 = pneg %p31
      $region34: #{vgg_block_pallas.1} parent=31 // pred_check_branch
        %180 = sbr.rel (%p178) target = $region36
      $region35: #{vgg_block_pallas.1} parent=31 // pred_region
        %p181 = scmp.lt.s32.totalorder %s11, 1
        %s182 = scalar_select %p181, %s11, 1
        %s183 = smul.addr %s182, 2
        %s184 = smul.addr %s183, 8
        %s185 = scalar_lea.vmem %s0, %s184
      $region36: #{vgg_block_pallas.1} parent=31 // pred_fallthru
        _
    $region32: #{vgg_block_pallas.1} parent=5 // pred_fallthru
      _
    %p186 = scmp.le.s32.totalorder 1, %s11
    %p187 = scmp.lt.s32.totalorder %s11, 3
    %p188 = pnand %p186, %p187
    %p189 = pneg %p188
    // Predicated region
    $region37: #{vgg_block_pallas.1} parent=5 // pred_check
      _
    $region38: #{vgg_block_pallas.1} parent=5 // pred_check_branch
      %191 = sbr.rel (%p188) target = $region40
    $region39: #{vgg_block_pallas.1} parent=5 // pred_region
      %s192 = ssub.s32 %s11, 1
      %p193 = scmp.lt.s32.totalorder %s16, 1
      %s194 = scalar_select %p193, %s16, 1
      %s195 = smul.addr %s194, 2
      %s196 = smul.addr %s195, 8
      %s197 = scalar_lea.vmem %s0, %s196
      %p198 = pneg %p37
      %p199 = pneg %p34
      %p200 = pneg %p58
      %p201 = pneg %p55
      %p202 = pneg %p79
      %p203 = pneg %p76
      %p204 = pneg %p100
      %p205 = pneg %p97
      %p206 = pneg %p121
      %p207 = pneg %p118
      %p208 = pneg %p147
      %p209 = pneg %p144
      %p210 = scmp.lt.s32.totalorder %s16, 1
      %s211 = scalar_select %p210, %s16, 1
      %s212 = smul.addr %s211, 2
      %s213 = smul.addr %s212, 8
      %s214 = scalar_lea.vmem %s5, %s213
      %p215 = scmp.lt.s32.totalorder %s16, 1
      %s216 = scalar_select %p215, %s16, 1
      %s217 = smul.addr %s216, 2
      %s218 = smul.addr %s217, 8
      %s219 = scalar_lea.vmem %s0, %s218
      %p220 = scmp.lt.s32.totalorder %s16, 1
      %s221 = scalar_select %p220, %s16, 1
      %s222 = smul.addr %s221, 2
      %s223 = smul.addr %s222, 8
      %s224 = scalar_lea.vmem %s5, %s223
      %v225 = vld [vmem:[%s219] sm:$0xff]
      %v226 = vld [vmem:[%s219 + $0x8] sm:$0xff]
      %v227 = vld [vmem:[%s1] sm:$0xff]
      %v228 = vld [vmem:[%s1 + $0x8] sm:$0xff]
      %v229 = vld [vmem:[%s1 + $0x10] sm:$0xff]
      %v230 = vld [vmem:[%s1 + $0x18] sm:$0xff]
      %v231 = vld [vmem:[%s1 + $0x20] sm:$0xff]
      %v232 = vld [vmem:[%s1 + $0x28] sm:$0xff]
      %v233 = vld [vmem:[%s1 + $0x30] sm:$0xff]
      %v234 = vld [vmem:[%s1 + $0x38] sm:$0xff]
      %vm235 = vcmask 523264
      %v237 = vsel %vm235, %v225, 0
      %v240 = vsel %vm235, %v226, 0
      %242 = vmatpush.msra.mxu0 0.0
      %243 = vmatpush.msra.mxu0 0.0
      %244 = vmatpush.msra.mxu0 0.0
      %245 = vmatpush.msra.mxu0 0.0
      %246 = vmatpush.msra.mxu0 0.0
      %247 = vmatpush.msra.mxu0 0.0
      %248 = vmatpush.msra.mxu0 0.0
      %249 = vmatpush.msra.mxu0 0.0
      %250 = vmatpush.msra.mxu0 %v234
      %251 = vmatpush.msra.mxu0 %v233
      %252 = vmatpush.msra.mxu0 %v232
      %253 = vmatpush.msra.mxu0 %v231
      %254 = vmatpush.msra.mxu0 %v230
      %255 = vmatpush.msra.mxu0 %v229
      %256 = vmatpush.msra.mxu0 %v228
      %257 = vmatpush.msra.mxu0 %v227
      %258 = vmatmul.f32.gmra.mxu0 %v237
      %v259 = vpop.f32.mrf.mxu0
      %v260 = vadd.f32 0.0, %v259
      %261 = vmatmul.f32.gmra.mxu0 %v240
      %v262 = vpop.f32.mrf.mxu0
      %v263 = vadd.f32 0.0, %v262
      %264 = vdwg.mxu0
      %s265 = scalar_lea.vmem %s1, 64
      %v266 = vld [vmem:[%s265] sm:$0xff]
      %v267 = vld [vmem:[%s265 + $0x8] sm:$0xff]
      %v268 = vld [vmem:[%s265 + $0x10] sm:$0xff]
      %v269 = vld [vmem:[%s265 + $0x18] sm:$0xff]
      %v270 = vld [vmem:[%s265 + $0x20] sm:$0xff]
      %v271 = vld [vmem:[%s265 + $0x28] sm:$0xff]
      %v272 = vld [vmem:[%s265 + $0x30] sm:$0xff]
      %v273 = vld [vmem:[%s265 + $0x38] sm:$0xff]
      %274 = vmatpush.msra.mxu0 0.0
      %275 = vmatpush.msra.mxu0 0.0
      %276 = vmatpush.msra.mxu0 0.0
      %277 = vmatpush.msra.mxu0 0.0
      %278 = vmatpush.msra.mxu0 0.0
      %279 = vmatpush.msra.mxu0 0.0
      %280 = vmatpush.msra.mxu0 0.0
      %281 = vmatpush.msra.mxu0 0.0
      %282 = vmatpush.msra.mxu0 %v273
      %283 = vmatpush.msra.mxu0 %v272
      %284 = vmatpush.msra.mxu0 %v271
      %285 = vmatpush.msra.mxu0 %v270
      %286 = vmatpush.msra.mxu0 %v269
      %287 = vmatpush.msra.mxu0 %v268
      %288 = vmatpush.msra.mxu0 %v267
      %289 = vmatpush.msra.mxu0 %v266
      %290 = vmatmul.f32.gmra.mxu0 %v237
      %v291 = vpop.f32.mrf.mxu0
      %v292 = vadd.f32 0.0, %v291
      %293 = vmatmul.f32.gmra.mxu0 %v240
      %v294 = vpop.f32.mrf.mxu0
      %v295 = vadd.f32 0.0, %v294
      %296 = vdwg.mxu0
      %s297 = scalar_lea.vmem %s1, 128
      %v298 = vld [vmem:[%s297] sm:$0xff]
      %v299 = vld [vmem:[%s297 + $0x8] sm:$0xff]
      %v300 = vld [vmem:[%s297 + $0x10] sm:$0xff]
      %v301 = vld [vmem:[%s297 + $0x18] sm:$0xff]
      %v302 = vld [vmem:[%s297 + $0x20] sm:$0xff]
      %v303 = vld [vmem:[%s297 + $0x28] sm:$0xff]
      %v304 = vld [vmem:[%s297 + $0x30] sm:$0xff]
      %v305 = vld [vmem:[%s297 + $0x38] sm:$0xff]
      %306 = vmatpush.msra.mxu0 0.0
      %307 = vmatpush.msra.mxu0 0.0
      %308 = vmatpush.msra.mxu0 0.0
      %309 = vmatpush.msra.mxu0 0.0
      %310 = vmatpush.msra.mxu0 0.0
      %311 = vmatpush.msra.mxu0 0.0
      %312 = vmatpush.msra.mxu0 0.0
      %313 = vmatpush.msra.mxu0 0.0
      %314 = vmatpush.msra.mxu0 %v305
      %315 = vmatpush.msra.mxu0 %v304
      %316 = vmatpush.msra.mxu0 %v303
      %317 = vmatpush.msra.mxu0 %v302
      %318 = vmatpush.msra.mxu0 %v301
      %319 = vmatpush.msra.mxu0 %v300
      %320 = vmatpush.msra.mxu0 %v299
      %321 = vmatpush.msra.mxu0 %v298
      %322 = vmatmul.f32.gmra.mxu0 %v237
      %v323 = vpop.f32.mrf.mxu0
      %v324 = vadd.f32 0.0, %v323
      %325 = vmatmul.f32.gmra.mxu0 %v240
      %v326 = vpop.f32.mrf.mxu0
      %v327 = vadd.f32 0.0, %v326
      %328 = vdwg.mxu0
      %v329 = vrot.slane %v260, 7
      %v330 = vrot.slane %v263, 7
      %v331 = vlaneseq
      %v332 = vshrl.u32 %v331, 7
      %vm333 = vcmp.lt.s32.totalorder %v332, 1
      %v334 = vsel %vm333, %v329, %v330
      %v335 = vsel %vm333, %v330, %v329
      %v336 = vadd.s32 %v332, 8
      %vm337 = vcmp.eq.s32.totalorder %v332, 0
      %vm338 = vcmp.eq.s32.totalorder %v336, 0
      %v339 = vsel %vm337, 0.0, %v335
      %v340 = vsel %vm338, 0.0, %v334
      %v341 = vadd.f32 %v339, %v292
      %v342 = vadd.f32 %v340, %v295
      %v343 = vrot.slane %v324, 1
      %v344 = vrot.slane %v327, 1
      %vm345 = vcmp.lt.s32.totalorder %v332, 7
      %v346 = vsel %vm345, %v343, %v344
      %v347 = vsel %vm345, %v344, %v343
      %vm348 = vcmp.eq.s32.totalorder %v332, 15
      %vm349 = vcmp.eq.s32.totalorder %v336, 15
      %v350 = vsel %vm348, 0.0, %v346
      %v351 = vsel %vm349, 0.0, %v347
      %v352 = vadd.f32 %v341, %v350
      %v353 = vadd.f32 %v342, %v351
      %v354 = vld [vmem:[%s2] sm:$0x1]
      %v356 = vperm.slane %v354, 0
      %v358 = vadd.f32 %v352, %v356
      %v359 = vadd.f32 %v353, %v356
      %v360 = vmax.f32 %v358, 0.0
      %v361 = vmax.f32 %v359, 0.0
      %v362 = vld [vmem:[%s3] sm:$0xff]
      %v363 = vld [vmem:[%s3 + $0x8] sm:$0xff]
      %v364 = vld [vmem:[%s3 + $0x10] sm:$0xff]
      %v365 = vld [vmem:[%s3 + $0x18] sm:$0xff]
      %v366 = vld [vmem:[%s3 + $0x20] sm:$0xff]
      %v367 = vld [vmem:[%s3 + $0x28] sm:$0xff]
      %v368 = vld [vmem:[%s3 + $0x30] sm:$0xff]
      %v369 = vld [vmem:[%s3 + $0x38] sm:$0xff]
      %v370 = vld [vmem:[%s3 + $0x40] sm:$0xff]
      %v371 = vld [vmem:[%s3 + $0x48] sm:$0xff]
      %v372 = vld [vmem:[%s3 + $0x50] sm:$0xff]
      %v373 = vld [vmem:[%s3 + $0x58] sm:$0xff]
      %v374 = vld [vmem:[%s3 + $0x60] sm:$0xff]
      %v375 = vld [vmem:[%s3 + $0x68] sm:$0xff]
      %v376 = vld [vmem:[%s3 + $0x70] sm:$0xff]
      %v377 = vld [vmem:[%s3 + $0x78] sm:$0xff]
      %378 = vmatpush.msra.mxu0 %v377
      %379 = vmatpush.msra.mxu0 %v376
      %380 = vmatpush.msra.mxu0 %v375
      %381 = vmatpush.msra.mxu0 %v374
      %382 = vmatpush.msra.mxu0 %v373
      %383 = vmatpush.msra.mxu0 %v372
      %384 = vmatpush.msra.mxu0 %v371
      %385 = vmatpush.msra.mxu0 %v370
      %386 = vmatpush.msra.mxu0 %v369
      %387 = vmatpush.msra.mxu0 %v368
      %388 = vmatpush.msra.mxu0 %v367
      %389 = vmatpush.msra.mxu0 %v366
      %390 = vmatpush.msra.mxu0 %v365
      %391 = vmatpush.msra.mxu0 %v364
      %392 = vmatpush.msra.mxu0 %v363
      %393 = vmatpush.msra.mxu0 %v362
      %394 = vmatmul.f32.gmra.mxu0 %v360
      %v395 = vpop.f32.mrf.mxu0
      %v396 = vadd.f32 0.0, %v395
      %397 = vmatmul.f32.gmra.mxu0 %v361
      %v398 = vpop.f32.mrf.mxu0
      %v399 = vadd.f32 0.0, %v398
      %400 = vdwg.mxu0
      %s401 = scalar_lea.vmem %s3, 128
      %v402 = vld [vmem:[%s401] sm:$0xff]
      %v403 = vld [vmem:[%s401 + $0x8] sm:$0xff]
      %v404 = vld [vmem:[%s401 + $0x10] sm:$0xff]
      %v405 = vld [vmem:[%s401 + $0x18] sm:$0xff]
      %v406 = vld [vmem:[%s401 + $0x20] sm:$0xff]
      %v407 = vld [vmem:[%s401 + $0x28] sm:$0xff]
      %v408 = vld [vmem:[%s401 + $0x30] sm:$0xff]
      %v409 = vld [vmem:[%s401 + $0x38] sm:$0xff]
      %v410 = vld [vmem:[%s401 + $0x40] sm:$0xff]
      %v411 = vld [vmem:[%s401 + $0x48] sm:$0xff]
      %v412 = vld [vmem:[%s401 + $0x50] sm:$0xff]
      %v413 = vld [vmem:[%s401 + $0x58] sm:$0xff]
      %v414 = vld [vmem:[%s401 + $0x60] sm:$0xff]
      %v415 = vld [vmem:[%s401 + $0x68] sm:$0xff]
      %v416 = vld [vmem:[%s401 + $0x70] sm:$0xff]
      %v417 = vld [vmem:[%s401 + $0x78] sm:$0xff]
      %418 = vmatpush.msra.mxu0 %v417
      %419 = vmatpush.msra.mxu0 %v416
      %420 = vmatpush.msra.mxu0 %v415
      %421 = vmatpush.msra.mxu0 %v414
      %422 = vmatpush.msra.mxu0 %v413
      %423 = vmatpush.msra.mxu0 %v412
      %424 = vmatpush.msra.mxu0 %v411
      %425 = vmatpush.msra.mxu0 %v410
      %426 = vmatpush.msra.mxu0 %v409
      %427 = vmatpush.msra.mxu0 %v408
      %428 = vmatpush.msra.mxu0 %v407
      %429 = vmatpush.msra.mxu0 %v406
      %430 = vmatpush.msra.mxu0 %v405
      %431 = vmatpush.msra.mxu0 %v404
      %432 = vmatpush.msra.mxu0 %v403
      %433 = vmatpush.msra.mxu0 %v402
      %434 = vmatmul.f32.gmra.mxu0 %v360
      %v435 = vpop.f32.mrf.mxu0
      %v436 = vadd.f32 0.0, %v435
      %437 = vmatmul.f32.gmra.mxu0 %v361
      %v438 = vpop.f32.mrf.mxu0
      %v439 = vadd.f32 0.0, %v438
      %440 = vdwg.mxu0
      %s441 = scalar_lea.vmem %s3, 256
      %v442 = vld [vmem:[%s441] sm:$0xff]
      %v443 = vld [vmem:[%s441 + $0x8] sm:$0xff]
      %v444 = vld [vmem:[%s441 + $0x10] sm:$0xff]
      %v445 = vld [vmem:[%s441 + $0x18] sm:$0xff]
      %v446 = vld [vmem:[%s441 + $0x20] sm:$0xff]
      %v447 = vld [vmem:[%s441 + $0x28] sm:$0xff]
      %v448 = vld [vmem:[%s441 + $0x30] sm:$0xff]
      %v449 = vld [vmem:[%s441 + $0x38] sm:$0xff]
      %v450 = vld [vmem:[%s441 + $0x40] sm:$0xff]
      %v451 = vld [vmem:[%s441 + $0x48] sm:$0xff]
      %v452 = vld [vmem:[%s441 + $0x50] sm:$0xff]
      %v453 = vld [vmem:[%s441 + $0x58] sm:$0xff]
      %v454 = vld [vmem:[%s441 + $0x60] sm:$0xff]
      %v455 = vld [vmem:[%s441 + $0x68] sm:$0xff]
      %v456 = vld [vmem:[%s441 + $0x70] sm:$0xff]
      %v457 = vld [vmem:[%s441 + $0x78] sm:$0xff]
      %458 = vmatpush.msra.mxu0 %v457
      %459 = vmatpush.msra.mxu0 %v456
      %460 = vmatpush.msra.mxu0 %v455
      %461 = vmatpush.msra.mxu0 %v454
      %462 = vmatpush.msra.mxu0 %v453
      %463 = vmatpush.msra.mxu0 %v452
      %464 = vmatpush.msra.mxu0 %v451
      %465 = vmatpush.msra.mxu0 %v450
      %466 = vmatpush.msra.mxu0 %v449
      %467 = vmatpush.msra.mxu0 %v448
      %468 = vmatpush.msra.mxu0 %v447
      %469 = vmatpush.msra.mxu0 %v446
      %470 = vmatpush.msra.mxu0 %v445
      %471 = vmatpush.msra.mxu0 %v444
      %472 = vmatpush.msra.mxu0 %v443
      %473 = vmatpush.msra.mxu0 %v442
      %474 = vmatmul.f32.gmra.mxu0 %v360
      %v475 = vpop.f32.mrf.mxu0
      %v476 = vadd.f32 0.0, %v475
      %477 = vmatmul.f32.gmra.mxu0 %v361
      %v478 = vpop.f32.mrf.mxu0
      %v479 = vadd.f32 0.0, %v478
      %480 = vdwg.mxu0
      %v481 = vrot.slane %v396, 7
      %v482 = vrot.slane %v399, 7
      %v483 = vsel %vm333, %v481, %v482
      %v484 = vsel %vm333, %v482, %v481
      %v485 = vsel %vm337, 0.0, %v484
      %v486 = vsel %vm338, 0.0, %v483
      %v487 = vadd.f32 %v485, %v436
      %v488 = vadd.f32 %v486, %v439
      %v489 = vrot.slane %v476, 1
      %v490 = vrot.slane %v479, 1
      %v491 = vsel %vm345, %v489, %v490
      %v492 = vsel %vm345, %v490, %v489
      %v493 = vsel %vm348, 0.0, %v491
      %v494 = vsel %vm349, 0.0, %v492
      %v495 = vadd.f32 %v487, %v493
      %v496 = vadd.f32 %v488, %v494
      %v497 = vld [vmem:[%s4] sm:$0x1]
      %v499 = vperm.slane %v497, 0
      %v501 = vadd.f32 %v495, %v499
      %v502 = vadd.f32 %v496, %v499
      %v503 = vmax.f32 %v501, 0.0
      %v504 = vmax.f32 %v502, 0.0
      %505 = vst [vmem:[%s224] sm:$0xff] %v503
      %506 = vst [vmem:[%s224 + $0x8] sm:$0xff] %v504
      %p507 = scmp.lt.s32.totalorder %s16, 1
      %s508 = scalar_select %p507, %s16, 1
      %s509 = smul.addr %s508, 2
      %s510 = smul.addr %s509, 8
      %s511 = scalar_lea.vmem %s5, %s510
      // Predicated region
      $region41: #{vgg_block_pallas.1} parent=39 // pred_check
        %p512 = pneg %p144
      $region42: #{vgg_block_pallas.1} parent=39 // pred_check_branch
        %514 = sbr.rel (%p512) target = $region44
      $region43: #{vgg_block_pallas.1} parent=39 // pred_region
        _
      $region44: #{vgg_block_pallas.1} parent=39 // pred_fallthru
        _
    $region40: #{vgg_block_pallas.1} parent=5 // pred_fallthru
      _
    %p515 = scmp.le.s32.totalorder 2, %s11
    // Predicated region
    $region45: #{vgg_block_pallas.1} parent=5 // pred_check
      %p516 = pneg %p515
    $region46: #{vgg_block_pallas.1} parent=5 // pred_check_branch
      %518 = sbr.rel (%p516) target = $region48
    $region47: #{vgg_block_pallas.1} parent=5 // pred_region
      %s519 = ssub.s32 %s11, 2
      // Predicated region
      $region49: #{vgg_block_pallas.1} parent=47 // pred_check
        %p520 = pneg %p150
      $region50: #{vgg_block_pallas.1} parent=47 // pred_check_branch
        %522 = sbr.rel (%p520) target = $region52
      $region51: #{vgg_block_pallas.1} parent=47 // pred_region
        %p523 = scmp.lt.s32.totalorder %s17, 1
        %s524 = scalar_select %p523, %s17, 1
        %s525 = smul.addr %s524, 2
        %s526 = smul.addr %s525, 8
        %s527 = scalar_lea.vmem %s5, %s526
      $region52: #{vgg_block_pallas.1} parent=47 // pred_fallthru
        _
    $region48: #{vgg_block_pallas.1} parent=5 // pred_fallthru
      _
  $region6: #{vgg_block_pallas.1} parent=0 // loop_footer
    %s15 = sadd.s32 1, %s11
  $region7: #{vgg_block_pallas.1} parent=0 // loop_footer_branch
    %10 = sbr.rel target = $region3
  $region8: #{vgg_block_pallas.1} parent=0 // loop_exit
    _

</llo_original>
